<compile_context>
chip_gen: v7x
topology: tpu7x:2x2x1
jax: 0.10.0
libtpu: 0.0.40
codegen_flags: <defaults>
</compile_context>

<pallas_src>
import math
import functools

import jax
import jax.numpy as jnp
from jax.experimental import pallas as pl
from jax.experimental.pallas import tpu as pltpu

TM = 512  # row tile for all row-tiled kernels (clamped to the problem size)

_P1 = pltpu.CompilerParams(dimension_semantics=("parallel",))
_P2 = pltpu.CompilerParams(dimension_semantics=("parallel", "arbitrary"))
_P3 = pltpu.CompilerParams(dimension_semantics=("parallel", "parallel", "parallel"))


# ----------------------------------------------------------------------------
# small helpers
# ----------------------------------------------------------------------------
def _round_up(n, m):
    return ((n + m - 1) // m) * m


def _row_tile(m, tm):
    t = min(tm, _round_up(m, 8))
    return t, _round_up(m, t)


def _pad_rows(x, mp):
    m = x.shape[0]
    if mp != m:
        x = jnp.pad(x, ((0, mp - m),) + ((0, 0),) * (x.ndim - 1))
    return x


def _pick_tile(n, candidates):
    for c in candidates:
        if n % c == 0:
            return c
    return n


# ----------------------------------------------------------------------------
# Pallas kernels
# ----------------------------------------------------------------------------
def _matmul_bias_kernel(x_ref, w_ref, b_ref, o_ref):
    acc = jnp.dot(x_ref[...].astype(jnp.bfloat16), w_ref[...],
                  preferred_element_type=jnp.float32)
    o_ref[...] = (acc + b_ref[...]).astype(o_ref.dtype)


def _token_fuse_kernel(x_ref, m2t_ref, w_ref, g_ref, b_ref, sw_ref, sb_ref,
                       xo_ref, so_ref):
    # skip 1x1 conv (MXU, bf16 operands) + map2token add + layernorm
    xs = jnp.dot(x_ref[...].astype(jnp.bfloat16), w_ref[...],
                 preferred_element_type=jnp.float32)
    t = xs + m2t_ref[...]
    mean = jnp.mean(t, axis=-1, keepdims=True)
    tc = t - mean
    var = jnp.mean(tc * tc, axis=-1, keepdims=True)
    y = (tc * jax.lax.rsqrt(var + 1e-5)) * g_ref[...] + b_ref[...]
    xo_ref[...] = y
    # score linear (dim_out -> 1) as a VPU row reduce, plus exp, in the same kernel
    score = jnp.sum(y * sw_ref[...], axis=-1, keepdims=True) + sb_ref[...]
    col = jax.lax.broadcasted_iota(jnp.int32, (score.shape[0], 2), 1)
    so_ref[...] = jnp.where(col == 0, score, jnp.exp(score))


def _ms_fuse_kernel(p_ref, w_ref, b_ref, x3_ref, g_ref, bb_ref, o_ref):
    # folded depthwise(5x5)+pointwise(1x1) as one MXU matmul, then +x_3, then LN
    acc = jnp.dot(p_ref[...].astype(jnp.bfloat16), w_ref[...],
                  preferred_element_type=jnp.float32)
    t = acc + b_ref[...] + x3_ref[...]
    mean = jnp.mean(t, axis=-1, keepdims=True)
    tc = t - mean
    var = jnp.mean(tc * tc, axis=-1, keepdims=True)
    o_ref[...] = (tc * jax.lax.rsqrt(var + 1e-5)) * g_ref[...] + bb_ref[...]


def _cdist_kernel(xq_ref, xk_ref, o_ref, *, inv_sqrt_c):
    xq = xq_ref[0]                                             # (TQ, C) f32
    xk = xk_ref[0]                                             # (TK, C) f32
    xx = jax.lax.dot_general(xq, xk, (((1,), (1,)), ((), ())),
                             preferred_element_type=jnp.float32)   # (TQ, TK)
    sq_q = jnp.sum(xq * xq, axis=-1, keepdims=True)            # (TQ, 1)
    sq_k = jnp.sum(xk * xk, axis=-1, keepdims=True)            # (TK, 1)
    d2 = jnp.maximum(sq_q + jnp.transpose(sq_k) - 2.0 * xx, 0.0)
    o_ref[0] = jnp.sqrt(d2) * inv_sqrt_c


def _merge_kernel(idx_ref, w_ref, xa_ref, o_ref):
    # per-batch scatter-add: one-hot built in-kernel, weight column folded into
    # the same matmul (last lane of xa is 1.0, so src = [x*w, w]).
    @pl.when(pl.program_id(1) == 0)
    def _():
        o_ref[...] = jnp.zeros_like(o_ref)

    idx = idx_ref[0]                                           # (1, TN) int32
    w = w_ref[0]                                               # (TN, 1) f32
    xa = xa_ref[0]                                             # (TN, C+1) f32
    kp = o_ref.shape[1]
    onehot = (jax.lax.broadcasted_iota(jnp.int32, (kp, idx.shape[1]), 0)
              == idx).astype(jnp.float32)                      # (Kp, TN)
    src = xa * w                                               # (TN, C+1)
    o_ref[0] += jax.lax.dot_general(onehot, src, (((1,), (0,)), ((), ())),
                                    preferred_element_type=jnp.float32)


# ----------------------------------------------------------------------------
# Pallas wrappers
# ----------------------------------------------------------------------------
def matmul_bias(x, w, b=None, out_dtype=jnp.float32, tm=TM):
    """out = x @ w + b with bf16 MXU operands, f32 accumulate."""
    M, K = x.shape
    N = w.shape[1]
    if b is None:
        b = jnp.zeros((N,), jnp.float32)
    t, Mp = _row_tile(M, tm)
    xp = _pad_rows(x, Mp)
    out = pl.pallas_call(
        _matmul_bias_kernel,
        out_shape=jax.ShapeDtypeStruct((Mp, N), out_dtype),
        grid=(Mp // t,),
        in_specs=[pl.BlockSpec((t, K), lambda i: (i, 0)),
                  pl.BlockSpec((K, N), lambda i: (0, 0)),
                  pl.BlockSpec((1, N), lambda i: (0, 0))],
        out_specs=pl.BlockSpec((t, N), lambda i: (i, 0)),
        compiler_params=_P1,
    )(xp, w.astype(jnp.bfloat16), b.reshape(1, N).astype(jnp.float32))
    return out[:M]


def token_fused(x2d, m2t2d, params, tm=TM):
    """skip-conv + map2token-add + layernorm + score + exp, fused."""
    M, Cin = x2d.shape
    Cout = m2t2d.shape[1]
    t, Mp = _row_tile(M, tm)
    xp = _pad_rows(x2d.astype(jnp.float32), Mp)
    mp_ = _pad_rows(m2t2d.astype(jnp.float32), Mp)
    xo, so = pl.pallas_call(
        _token_fuse_kernel,
        out_shape=(jax.ShapeDtypeStruct((Mp, Cout), jnp.float32),
                   jax.ShapeDtypeStruct((Mp, 2), jnp.float32)),
        grid=(Mp // t,),
        in_specs=[pl.BlockSpec((t, Cin), lambda i: (i, 0)),
                  pl.BlockSpec((t, Cout), lambda i: (i, 0)),
                  pl.BlockSpec((Cin, Cout), lambda i: (0, 0)),
                  pl.BlockSpec((1, Cout), lambda i: (0, 0)),
                  pl.BlockSpec((1, Cout), lambda i: (0, 0)),
                  pl.BlockSpec((1, Cout), lambda i: (0, 0)),
                  pl.BlockSpec((1, 1), lambda i: (0, 0))],
        out_specs=(pl.BlockSpec((t, Cout), lambda i: (i, 0)),
                   pl.BlockSpec((t, 2), lambda i: (i, 0))),
        compiler_params=_P1,
    )(xp, mp_, params['conv_skip_w'].astype(jnp.bfloat16),
      params['norm_g'].reshape(1, Cout).astype(jnp.float32),
      params['norm_b'].reshape(1, Cout).astype(jnp.float32),
      params['score_w'].reshape(1, Cout).astype(jnp.float32),
      params['score_b'].reshape(1, 1).astype(jnp.float32))
    return xo[:M], so[:M]


def ms_fused(pat, w_fold, b_fold, x3, g, b, tm=TM):
    """folded depthwise+pointwise matmul + x_3 add + layernorm, fused."""
    M, K = pat.shape
    Cout = w_fold.shape[1]
    t, Mp = _row_tile(M, tm)
    patp = _pad_rows(pat, Mp)
    x3p = _pad_rows(x3.astype(jnp.float32), Mp)
    out = pl.pallas_call(
        _ms_fuse_kernel,
        out_shape=jax.ShapeDtypeStruct((Mp, Cout), jnp.float32),
        grid=(Mp // t,),
        in_specs=[pl.BlockSpec((t, K), lambda i: (i, 0)),
                  pl.BlockSpec((K, Cout), lambda i: (0, 0)),
                  pl.BlockSpec((1, Cout), lambda i: (0, 0)),
                  pl.BlockSpec((t, Cout), lambda i: (i, 0)),
                  pl.BlockSpec((1, Cout), lambda i: (0, 0)),
                  pl.BlockSpec((1, Cout), lambda i: (0, 0))],
        out_specs=pl.BlockSpec((t, Cout), lambda i: (i, 0)),
        compiler_params=_P1,
    )(patp, w_fold.astype(jnp.bfloat16),
      b_fold.reshape(1, Cout).astype(jnp.float32), x3p,
      g.reshape(1, Cout).astype(jnp.float32),
      b.reshape(1, Cout).astype(jnp.float32))
    return out[:M]


def pairwise_dist(x, tq=256, tk=512):
    """torch.cdist(x, x) / sqrt(C), tiled over (B, Q-tiles, KV-tiles)."""
    B, N, C = x.shape
    Np = _round_up(N, 128)
    xp = jnp.pad(x.astype(jnp.float32), ((0, 0), (0, Np - N), (0, 0)))
    tq = _pick_tile(Np, (min(tq, Np), 128))
    tk = _pick_tile(Np, (min(tk, Np), 256, 128))
    kern = functools.partial(_cdist_kernel, inv_sqrt_c=1.0 / math.sqrt(C))
    out = pl.pallas_call(
        kern,
        out_shape=jax.ShapeDtypeStruct((B, Np, Np), jnp.float32),
        grid=(B, Np // tq, Np // tk),
        in_specs=[pl.BlockSpec((1, tq, C), lambda b, i, j: (b, i, 0)),
                  pl.BlockSpec((1, tk, C), lambda b, i, j: (b, j, 0))],
        out_specs=pl.BlockSpec((1, tq, tk), lambda b, i, j: (b, i, j)),
        compiler_params=_P3,
    )(xp, xp)
    return out[:, :N, :N]


def merge_scatter_sums(x, token_weight, idx_cluster, cluster_num, tn=512):
    """per-cluster sums of [x*w, w] via per-batch Pallas scatter-add."""
    B, N, C = x.shape
    Kp = _round_up(cluster_num, 8)
    tn = min(tn, _round_up(N, 128))
    Np = _round_up(N, tn)
    xa = jnp.concatenate([x, jnp.ones((B, N, 1), x.dtype)], axis=-1)
    xa = jnp.pad(xa.astype(jnp.float32), ((0, 0), (0, Np - N), (0, 0)))
    w = jnp.pad(token_weight.astype(jnp.float32), ((0, 0), (0, Np - N), (0, 0)))
    idx = jnp.pad(idx_cluster.astype(jnp.int32), ((0, 0), (0, Np - N)))
    idx = idx.reshape(B, 1, Np)
    sums = pl.pallas_call(
        _merge_kernel,
        out_shape=jax.ShapeDtypeStruct((B, Kp, C + 1), jnp.float32),
        grid=(B, Np // tn),
        in_specs=[pl.BlockSpec((1, 1, tn), lambda b, t: (b, 0, t)),
                  pl.BlockSpec((1, tn, 1), lambda b, t: (b, t, 0)),
                  pl.BlockSpec((1, tn, C + 1), lambda b, t: (b, t, 0))],
        out_specs=pl.BlockSpec((1, Kp, C + 1), lambda b, t: (b, 0, 0)),
        compiler_params=_P2,
    )(idx, w, xa)
    return sums[:, :cluster_num]


# ----------------------------------------------------------------------------
# plain-JAX glue (patch extraction, gathers, top-k bookkeeping)
# ----------------------------------------------------------------------------
def extract_patches(x_nhwc, ksize, stride, pad):
    """im2col emitted directly in (B, Ho, Wo, K*K, C) layout (no transpose copy)."""
    B, H, W, C = x_nhwc.shape
    Ho = (H + 2 * pad - ksize) // stride + 1
    Wo = (W + 2 * pad - ksize) // stride + 1
    xp = jnp.pad(x_nhwc, ((0, 0), (pad, pad), (pad, pad), (0, 0)))
    slices = []
    for kh in range(ksize):
        for kw in range(ksize):
            s = xp[:, kh:kh + stride * (Ho - 1) + 1:stride,
                   kw:kw + stride * (Wo - 1) + 1:stride, :]
            slices.append(s)
    # TODO(synk): a halo-read Pallas conv kernel would avoid materializing this
    #   K*K-duplicated tensor in HBM entirely.
    return jnp.stack(slices, axis=3), Ho, Wo       # (B, Ho, Wo, K*K, C)


def map2token_grid(x_map_nhwc, H_init, W_init):
    """map2token for grid-structured token dicts: nearest-neighbour gather."""
    B, Ho, Wo, C = x_map_nhwc.shape
    hs = (jnp.arange(H_init) * Ho) // H_init
    ws = (jnp.arange(W_init) * Wo) // W_init
    g = x_map_nhwc[:, hs][:, :, ws]                # (B, H_init, W_init, C)
    # sparse-A normalisation in the reference adds 1e-6 to the row sum (==1)
    return g.reshape(B, H_init * W_init, C) * (1.0 / (1.0 + 1e-6))


# ----------------------------------------------------------------------------
# CTM building blocks
# ----------------------------------------------------------------------------
def multiscale_fused(params, x, x_3, map_size):
    """Multiscale branch + norm1, with depthwise folded into the pointwise MXU matmul."""
    B, N, Cin = x.shape
    H, W = map_size
    Cout = params['ms_skip_w'].shape[1]
    # skip 1x1 conv (no bias); bf16 output so the 25x im2col lives in HBM as bf16
    xs = matmul_bias(x.reshape(B * N, Cin), params['ms_skip_w'], None,
                     out_dtype=jnp.bfloat16)
    xs = xs.reshape(B, H, W, Cout)
    patches, Ho, Wo = extract_patches(xs, 5, 2, 2)            # (B,Ho,Wo,25,C) bf16
    pat = patches.reshape(B * Ho * Wo, 25 * Cout)
    w_fold = (params['ms_dw_w'][:, :, None] *
              params['ms_pw_w'][None, :, :]).reshape(25 * Cout, Cout)
    b_fold = params['ms_dw_b'] @ params['ms_pw_w'] + params['ms_pw_b']
    out = ms_fused(pat, w_fold, b_fold, x_3.reshape(B * Ho * Wo, Cout),
                   params['norm1_g'], params['norm1_b'])
    return out.reshape(B, Ho * Wo, Cout)


def cluster_dpc_knn_jax(x, cluster_num, k, noise):
    B, N, C = x.shape
    dist_matrix = pairwise_dist(x)                 # Pallas tiled cdist / sqrt(C)
    # TODO(synk): flash-fuse the kNN-density and masked-min reductions into the
    #   tiled cdist kernel (online over KV tiles) to avoid materializing the
    #   (B, N, N) matrix; kept in XLA here (top_k has no Mosaic lowering).
    neg_vals, _ = jax.lax.top_k(-dist_matrix, k)
    density = jnp.exp(-jnp.mean(neg_vals * neg_vals, axis=-1))
    density = density + noise * 1e-6               # tie-break noise (ref uses torch.rand)
    dist_max = jnp.max(dist_matrix.reshape(B, -1), axis=-1)[:, None, None]
    higher = density[:, None, :] > density[:, :, None]
    dist = jnp.min(jnp.where(higher, dist_matrix, dist_max), axis=-1)
    score = dist * density
    _, index_down = jax.lax.top_k(score, cluster_num)          # (B, cluster_num)
    idx_bc = jnp.broadcast_to(index_down[:, :, None], (B, cluster_num, N))
    dist_to_centers = jnp.take_along_axis(dist_matrix, idx_bc, axis=1)
    idx_cluster = jnp.argmin(dist_to_centers, axis=1).astype(jnp.int32)
    centers = jnp.broadcast_to(jnp.arange(cluster_num, dtype=jnp.int32)[None, :],
                               (B, cluster_num))
    idx_cluster = idx_cluster.at[jnp.arange(B)[:, None], index_down].set(centers)
    return idx_cluster


def merge_tokens_jax(token_dict, idx_cluster, cluster_num, token_weight):
    x = token_dict['x']
    idx_token = token_dict['idx_token']
    agg_weight = token_dict['agg_weight']
    B, N, C = x.shape

    sums = merge_scatter_sums(x, token_weight, idx_cluster, cluster_num)
    all_weight = sums[:, :, C:] + 1e-6                         # (B, K, 1)
    x_merged = sums[:, :, :C] / all_weight                     # (B, K, C)
    norm_weight = token_weight / jnp.take_along_axis(
        all_weight, idx_cluster[:, :, None], axis=1)           # (B, N, 1)

    idx_token_new = jnp.take_along_axis(idx_cluster, idx_token, axis=1)
    weight_t = jnp.take_along_axis(agg_weight, idx_token[..., None], axis=1)
    agg_weight_new = weight_t * jnp.take_along_axis(norm_weight,
                                                    idx_token[..., None], axis=1)
    agg_weight_new = agg_weight_new / jnp.max(agg_weight_new, axis=1, keepdims=True)

    return {'x': x_merged,
            'token_num': cluster_num,
            'map_size': token_dict['map_size'],
            'init_grid_size': token_dict['init_grid_size'],
            'idx_token': idx_token_new,
            'agg_weight': agg_weight_new}


# ----------------------------------------------------------------------------
# CTM forward
# ----------------------------------------------------------------------------
def ctm_forward(params, token_dict, sample_ratio, k, noise):
    token_dict = dict(token_dict)
    x_in = token_dict['x']                                     # (B, N, embed_dim)
    B, N0, Cin = x_in.shape
    H, W = token_dict['map_size']
    Cout = params['conv_w'].shape[0]

    # --- TokenConv_map: 3x3 s2 conv on the grid map (im2col + MXU matmul) ---
    x_map = x_in.reshape(B, H, W, Cin).astype(jnp.bfloat16)
    patches3, Ho, Wo = extract_patches(x_map, 3, 2, 1)         # (B,Ho,Wo,9,Cin) bf16
    pat3 = patches3.reshape(B * Ho * Wo, 9 * Cin)
    w3 = jnp.transpose(params['conv_w'], (2, 3, 1, 0)).reshape(9 * Cin, Cout)
    x_map_out = matmul_bias(pat3, w3, params['conv_b'])        # (B*Ho*Wo, Cout) f32
    x_map_out = x_map_out.reshape(B, Ho, Wo, Cout)
    x_3 = x_map_out.reshape(B, Ho * Wo, Cout)

    m2t = map2token_grid(x_map_out, H, W)                      # (B, N0, Cout)

    # --- fused: skip conv + add + layernorm + score + exp ---
    x_norm, score2 = token_fused(x_in.reshape(B * N0, Cin),
                                 m2t.reshape(B * N0, Cout), params)
    x = x_norm.reshape(B, N0, Cout)
    token_score = score2[:, 0:1].reshape(B, N0, 1)
    token_weight = score2[:, 1:2].reshape(B, N0, 1)
    token_dict['token_score'] = token_score
    token_dict['x'] = x

    # --- clustering + merge ---
    cluster_num = max(math.ceil(N0 * sample_ratio), 1)
    idx_cluster = cluster_dpc_knn_jax(x, cluster_num, k, noise)
    down_dict = merge_tokens_jax(token_dict, idx_cluster, cluster_num, token_weight)
    down_dict['token_num'] = down_dict['x'].shape[1]
    H2 = math.floor((H - 1) / 2 + 1)
    W2 = math.floor((W - 1) / 2 + 1)
    down_dict['map_size'] = [H2, W2]

    # --- Multiscale branch + norm1 (uses original, un-downsampled map_size) ---
    x_kv = multiscale_fused(params, x_in, x_3, (H, W))
    token_dict['x'] = x_kv
    return down_dict, token_dict, (H2, W2)


# ----------------------------------------------------------------------------
# deterministic parameter init (proj_q is defined in __init__ but unused)
# ----------------------------------------------------------------------------
def init_params(key, embed_dim, dim_out):
    ks = jax.random.split(key, 10)
    nrm = lambda k, s: 0.02 * jax.random.normal(k, s, jnp.float32)
    return {
        'conv_skip_w': nrm(ks[0], (embed_dim, dim_out)),     # Conv1d (D,E,1) -> (E,D)
        'conv_w':      nrm(ks[1], (dim_out, embed_dim, 3, 3)),
        'conv_b':      nrm(ks[2], (dim_out,)),
        'ms_skip_w':   nrm(ks[3], (embed_dim, dim_out)),
        'ms_dw_w':     nrm(ks[4], (25, dim_out)),            # depthwise (D,1,5,5) -> (25,D)
        'ms_dw_b':     nrm(ks[5], (dim_out,)),
        'ms_pw_w':     nrm(ks[6], (dim_out, dim_out)),       # pointwise W.T
        'ms_pw_b':     nrm(ks[7], (dim_out,)),
        'score_w':     nrm(ks[8], (dim_out, 1)),
        'score_b':     nrm(ks[9], (1,)),
        'norm_g':  jnp.ones((dim_out,), jnp.float32),
        'norm_b':  jnp.zeros((dim_out,), jnp.float32),
        'norm1_g': jnp.ones((dim_out,), jnp.float32),
        'norm1_b': jnp.zeros((dim_out,), jnp.float32),
    }


if __name__ == "__main__":
    key = jax.random.PRNGKey(0)
    B, H, W = 2, 16, 16
    embed_dim, dim_out = 16, 32
    sample_ratio, k = 0.25, 5
    N = H * W

    k_x, k_p, k_noise = jax.random.split(key, 3)
    x = jax.random.normal(k_x, (B, N, embed_dim), jnp.float32)
    token_dict = {
        'x': x,
        'token_num': N,
        'map_size': [H, W],
        'init_grid_size': [H, W],
        'idx_token': jnp.tile(jnp.arange(N, dtype=jnp.int32)[None], (B, 1)),
        'agg_weight': jnp.ones((B, N, 1), jnp.float32),
    }
    params = init_params(k_p, embed_dim, dim_out)
    noise = jax.random.uniform(k_noise, (B, N), jnp.float32)

    down_dict, out_dict, hw = ctm_forward(params, token_dict, sample_ratio, k, noise)
    jax.block_until_ready((down_dict['x'], down_dict['agg_weight'],
                           out_dict['x'], out_dict['token_score']))

    assert down_dict['x'].shape == (B, max(math.ceil(N * sample_ratio), 1), dim_out)
    assert out_dict['x'].shape == (B, hw[0] * hw[1], dim_out)
    print("KERNEL_OK")
</pallas_src>

<mosaic_0001>
module attributes {stable_mosaic.version = 11 : i64} {
  func.func @_matmul_bias_kernel(%arg0: i32, %arg1: memref<128x144xbf16, #tpu.memory_space<vmem>>, %arg2: memref<144x32xbf16, #tpu.memory_space<vmem>>, %arg3: memref<1x32xf32, #tpu.memory_space<vmem>>, %arg4: memref<128x32xf32, #tpu.memory_space<vmem>>) attributes {dimension_semantics = [#tpu.dimension_semantics<parallel>], iteration_bounds = array<i64: 1>, scalar_prefetch = 0 : i64, scratch_operands = 0 : i64, tpu.core_type = #tpu.core_type<tc>, window_params = [{transform_indices = @transform_0, window_bounds = array<i64: 128, 144>}, {pipeline_mode = #tpu.pipeline_mode<synchronous>, transform_indices = @transform_1, window_bounds = array<i64: 144, 32>}, {pipeline_mode = #tpu.pipeline_mode<synchronous>, transform_indices = @transform_2, window_bounds = array<i64: 1, 32>}, {transform_indices = @transform_3, window_bounds = array<i64: 128, 32>}]} {
    %c0 = arith.constant 0 : index
    %c0_0 = arith.constant 0 : index
    %0 = vector.load %arg1[%c0, %c0_0] : memref<128x144xbf16, #tpu.memory_space<vmem>>, vector<128x144xbf16>
    %c0_1 = arith.constant 0 : index
    %c0_2 = arith.constant 0 : index
    %1 = vector.load %arg2[%c0_1, %c0_2] : memref<144x32xbf16, #tpu.memory_space<vmem>>, vector<144x32xbf16>
    %cst = arith.constant dense<0.000000e+00> : vector<128x32xf32>
    %2 = tpu.matmul %0, %1, %cst {dimension_numbers = #tpu.dot_dimension_numbers<[1], [0], [0], [1], [0, 0, 1, 1], [], []>} : vector<128x144xbf16>, vector<144x32xbf16>, vector<128x32xf32> -> vector<128x32xf32>
    %c0_3 = arith.constant 0 : index
    %c0_4 = arith.constant 0 : index
    %3 = vector.load %arg3[%c0_3, %c0_4] : memref<1x32xf32, #tpu.memory_space<vmem>>, vector<1x32xf32>
    %4 = vector.broadcast %3 : vector<1x32xf32> to vector<128x32xf32>
    %5 = arith.addf %2, %4 : vector<128x32xf32>
    %c0_5 = arith.constant 0 : index
    %c0_6 = arith.constant 0 : index
    %6 = vector.load %arg4[%c0_5, %c0_6] : memref<128x32xf32, #tpu.memory_space<vmem>>, vector<128x32xf32>
    tpu.vector_store %arg4[%c0_5, %c0_6], %5 {strides = array<i32>} : memref<128x32xf32, #tpu.memory_space<vmem>>, vector<128x32xf32>,
    return
  }
  func.func @transform_0(%arg0: i32) -> (i32, i32) {
    %c0_i32 = arith.constant 0 : i32
    %c0_i32_0 = arith.constant 0 : i32
    return %arg0, %c0_i32 : i32, i32
  }
  func.func @transform_1(%arg0: i32) -> (i32, i32) {
    %c0_i32 = arith.constant 0 : i32
    %c0_i32_0 = arith.constant 0 : i32
    %c0_i32_1 = arith.constant 0 : i32
    return %c0_i32, %c0_i32_0 : i32, i32
  }
  func.func @transform_2(%arg0: i32) -> (i32, i32) {
    %c0_i32 = arith.constant 0 : i32
    %c0_i32_0 = arith.constant 0 : i32
    %c0_i32_1 = arith.constant 0 : i32
    return %c0_i32, %c0_i32_0 : i32, i32
  }
  func.func @transform_3(%arg0: i32) -> (i32, i32) {
    %c0_i32 = arith.constant 0 : i32
    %c0_i32_0 = arith.constant 0 : i32
    return %arg0, %c0_i32 : i32, i32
  }
}

</mosaic_0001>

<llo_original>
// kernel: tpu_custom_call.1
$region0: #{tpu_custom_call.1}
  #allocation0 [shape = 'u32[]', space=smem, size = 0x4, offset = 0x4, fixed_abs, tag = 'smem constant byte address 0x4 - core index']
  #allocation1 [shape = 'u32[144,128]{1,0:T(1,128)}', space=vmem, size = 0x12000, scoped, tag = 'internal scratch']
  %s0 = inlined_call_operand.vmem [shape: bf16[128,144], index: 0, kind: input, shape index: {}]
  %s1 = inlined_call_operand.vmem [shape: bf16[144,32], index: 1, kind: input, shape index: {}]
  %s2 = inlined_call_operand.vmem [shape: f32[1,32], index: 2, kind: input, shape index: {}]
  %s3 = inlined_call_operand.vmem [shape: f32[128,32], index: 3, kind: output, shape index: {}]
  %s4 = sld [smem:[#allocation0]]
  $region22: #{tpu_custom_call.1} parent=0
    _
  %s6 = ssub.s32 1, %s4
  %s7 = scalar_select 0, %s6, %s4
  // Predicated region
  $region2: #{tpu_custom_call.1} parent=0 // pred_check
    _
  $region3: #{tpu_custom_call.1} parent=0 // pred_check_branch
    %9 = sbr.rel (0) target = $region5
  $region4: #{tpu_custom_call.1} parent=0 // pred_region
    _
  $region5: #{tpu_custom_call.1} parent=0 // pred_fallthru
    _
  // Predicated region
  $region6: #{tpu_custom_call.1} parent=0 // pred_check
    _
  $region7: #{tpu_custom_call.1} parent=0 // pred_check_branch
    %11 = sbr.rel (0) target = $region9
  $region8: #{tpu_custom_call.1} parent=0 // pred_region
    _
  $region9: #{tpu_custom_call.1} parent=0 // pred_fallthru
    _
  // Predicated region
  $region10: #{tpu_custom_call.1} parent=0 // pred_check
    _
  $region11: #{tpu_custom_call.1} parent=0 // pred_check_branch
    %13 = sbr.rel (0) target = $region13
  $region12: #{tpu_custom_call.1} parent=0 // pred_region
    _
  $region13: #{tpu_custom_call.1} parent=0 // pred_fallthru
    _
  %v15 = vld [vmem:[%s0] sm:$0xff]
  %v16 = vld [vmem:[%s0 + $0x8] sm:$0xff]
  %v17 = vld [vmem:[%s0 + $0x10] sm:$0xff]
  %v18 = vld [vmem:[%s0 + $0x18] sm:$0xff]
  %v19 = vld [vmem:[%s0 + $0x20] sm:$0xff]
  %v20 = vld [vmem:[%s0 + $0x28] sm:$0xff]
  %v21 = vld [vmem:[%s0 + $0x30] sm:$0xff]
  %v22 = vld [vmem:[%s0 + $0x38] sm:$0xff]
  %v23 = vld [vmem:[%s0 + $0x40] sm:$0xff]
  %v24 = vld [vmem:[%s0 + $0x48] sm:$0xff]
  %v25 = vld [vmem:[%s0 + $0x50] sm:$0xff]
  %v26 = vld [vmem:[%s0 + $0x58] sm:$0xff]
  %v27 = vld [vmem:[%s0 + $0x60] sm:$0xff]
  %v28 = vld [vmem:[%s0 + $0x68] sm:$0xff]
  %v29 = vld [vmem:[%s0 + $0x70] sm:$0xff]
  %v30 = vld [vmem:[%s0 + $0x78] sm:$0xff]
  %v31 = vld [vmem:[%s1] sm:$0xf]
  %v32 = vld [vmem:[%s1 + $0x4] sm:$0xf]
  %v33 = vld [vmem:[%s1 + $0x8] sm:$0xf]
  %v34 = vld [vmem:[%s1 + $0xc] sm:$0xf]
  %v35 = vld [vmem:[%s1 + $0x10] sm:$0xf]
  %v36 = vld [vmem:[%s1 + $0x14] sm:$0xf]
  %v37 = vld [vmem:[%s1 + $0x18] sm:$0xf]
  %v38 = vld [vmem:[%s1 + $0x1c] sm:$0xf]
  %v39 = vld [vmem:[%s1 + $0x20] sm:$0xf]
  %v40 = vld [vmem:[%s1 + $0x24] sm:$0xf]
  %v41 = vld [vmem:[%s1 + $0x28] sm:$0xf]
  %v42 = vld [vmem:[%s1 + $0x2c] sm:$0xf]
  %v43 = vld [vmem:[%s1 + $0x30] sm:$0xf]
  %v44 = vld [vmem:[%s1 + $0x34] sm:$0xf]
  %v45 = vld [vmem:[%s1 + $0x38] sm:$0xf]
  %v46 = vld [vmem:[%s1 + $0x3c] sm:$0xf]
  %v47 = vld [vmem:[%s1 + $0x40] sm:$0xf]
  %v48 = vld [vmem:[%s1 + $0x44] sm:$0xf]
  %v49 = vld [vmem:[%s2] sm:$0x1]
  %v51 = vlaneseq
  %v52 = vshrl.u32 %v51, 7
  %v53 = vsub.s32 0, %v52
  %v54 = vrot.slane %v49, %v53
  %v72 = vunpack.c.l.b16 %v15
  %v73 = vunpack.c.h.b16 %v15
  %v74 = vunpack.c.l.b16 %v16
  %v75 = vunpack.c.h.b16 %v16
  %v76 = vunpack.c.l.b16 %v17
  %v77 = vunpack.c.h.b16 %v17
  %v78 = vunpack.c.l.b16 %v18
  %v79 = vunpack.c.h.b16 %v18
  %v80 = vunpack.c.l.b16 %v19
  %v81 = vunpack.c.h.b16 %v19
  %v82 = vunpack.c.l.b16 %v20
  %v83 = vunpack.c.h.b16 %v20
  %v84 = vunpack.c.l.b16 %v21
  %v85 = vunpack.c.h.b16 %v21
  %v86 = vunpack.c.l.b16 %v22
  %v87 = vunpack.c.h.b16 %v22
  %v88 = vunpack.c.l.b16 %v23
  %v89 = vunpack.c.h.b16 %v23
  %v90 = vunpack.c.l.b16 %v24
  %v91 = vunpack.c.h.b16 %v24
  %v92 = vunpack.c.l.b16 %v25
  %v93 = vunpack.c.h.b16 %v25
  %v94 = vunpack.c.l.b16 %v26
  %v95 = vunpack.c.h.b16 %v26
  %v96 = vunpack.c.l.b16 %v27
  %v97 = vunpack.c.h.b16 %v27
  %v98 = vunpack.c.l.b16 %v28
  %v99 = vunpack.c.h.b16 %v28
  %v100 = vunpack.c.l.b16 %v29
  %v101 = vunpack.c.h.b16 %v29
  %v102 = vunpack.c.l.b16 %v30
  %v103 = vunpack.c.h.b16 %v30
  %v104 = vpack.c.b16 %v74, %v72
  %v105 = vpack.c.b16 %v75, %v73
  %v106 = vpack.c.b16 %v78, %v76
  %v107 = vpack.c.b16 %v79, %v77
  %v108 = vpack.c.b16 %v82, %v80
  %v109 = vpack.c.b16 %v83, %v81
  %v110 = vpack.c.b16 %v86, %v84
  %v111 = vpack.c.b16 %v87, %v85
  %v112 = vpack.c.b16 %v90, %v88
  %v113 = vpack.c.b16 %v91, %v89
  %v114 = vpack.c.b16 %v94, %v92
  %v115 = vpack.c.b16 %v95, %v93
  %v116 = vpack.c.b16 %v98, %v96
  %v117 = vpack.c.b16 %v99, %v97
  %v118 = vpack.c.b16 %v102, %v100
  %v119 = vpack.c.b16 %v103, %v101
  %v146 = vunpack.c.l.b16 %v31
  %v147 = vunpack.c.l.b16 %v32
  %v148 = vunpack.c.l.b16 %v33
  %v149 = vunpack.c.l.b16 %v34
  %v150 = vunpack.c.l.b16 %v35
  %v151 = vunpack.c.l.b16 %v36
  %v152 = vunpack.c.l.b16 %v37
  %v153 = vunpack.c.l.b16 %v38
  %v154 = vunpack.c.l.b16 %v39
  %v155 = vunpack.c.l.b16 %v40
  %v156 = vunpack.c.l.b16 %v41
  %v157 = vunpack.c.l.b16 %v42
  %v158 = vunpack.c.l.b16 %v43
  %v159 = vunpack.c.l.b16 %v44
  %v160 = vunpack.c.l.b16 %v45
  %v161 = vunpack.c.l.b16 %v46
  %v162 = vunpack.c.l.b16 %v47
  %v163 = vunpack.c.l.b16 %v48
  %v164 = vpack.c.b16 %v147, %v146
  %v165 = vpack.c.b16 %v149, %v148
  %v166 = vpack.c.b16 %v151, %v150
  %v167 = vpack.c.b16 %v153, %v152
  %v168 = vpack.c.b16 %v155, %v154
  %v169 = vpack.c.b16 %v157, %v156
  %v170 = vpack.c.b16 %v159, %v158
  %v171 = vpack.c.b16 %v161, %v160
  %v172 = vpack.c.b16 %v163, %v162
  %vm182 = vcmask 130048
  %v184 = vsel %vm182, %v105, 0
  %v187 = vsel %vm182, %v107, 0
  %v190 = vsel %vm182, %v109, 0
  %v193 = vsel %vm182, %v111, 0
  %v196 = vsel %vm182, %v113, 0
  %v199 = vsel %vm182, %v115, 0
  %v202 = vsel %vm182, %v117, 0
  %v205 = vsel %vm182, %v119, 0
  %207 = vmatprep.subr.bf16.mxu0 0
  %208 = vmatpush1.bf16.msra.mxu0 %v164
  %209 = vmatprep.subr.bf16.mxu0 0
  %210 = vmatpush1.bf16.msra.mxu0 %v165
  %211 = vmatprep.subr.bf16.mxu0 0
  %212 = vmatpush1.bf16.msra.mxu0 %v166
  %213 = vmatprep.subr.bf16.mxu0 0
  %214 = vmatpush1.bf16.msra.mxu0 %v167
  %215 = vmatprep.subr.bf16.mxu0 0
  %216 = vmatpush1.bf16.msra.mxu0 %v168
  %217 = vmatprep.subr.bf16.mxu0 0
  %218 = vmatpush1.bf16.msra.mxu0 %v169
  %219 = vmatprep.subr.bf16.mxu0 0
  %220 = vmatpush1.bf16.msra.mxu0 %v170
  %221 = vmatprep.subr.bf16.mxu0 0
  %222 = vmatpush1.bf16.msra.mxu0 %v171
  %223 = vmatprep.subr.bf16.mxu0 0
  %224 = vmatpush1.bf16.msra.mxu0 %v172
  %225 = vmatprep.subr.bf16.mxu0 0
  %226 = vmatpush1.bf16.msra.mxu0 0
  %227 = vmatprep.subr.bf16.mxu0 0
  %228 = vmatpush1.bf16.msra.mxu0 0
  %229 = vmatprep.subr.bf16.mxu0 0
  %230 = vmatpush1.bf16.msra.mxu0 0
  %231 = vmatprep.subr.bf16.mxu0 0
  %232 = vmatpush1.bf16.msra.mxu0 0
  %233 = vmatprep.subr.bf16.mxu0 0
  %234 = vmatpush1.bf16.msra.mxu0 0
  %235 = vmatprep.subr.bf16.mxu0 0
  %236 = vmatpush1.bf16.msra.mxu0 0
  %237 = vmatprep.subr.bf16.mxu0 0
  %238 = vmatpush1.bf16.msra.mxu0 0
  %239 = vmatprep.mubr.bf16.mxu0 %v184
  %240 = vmatmul.mubr.bf16.gmra.mrb[0].mxu0 %v104
  %v241 = vpop.f32.mrb[0].mxu0
  %v242 = vadd.f32 %v54, %v241
  %v243 = vpop.f32.mrb[0].mxu0
  %v244 = vpop.f32.mrb[0].mxu0
  %v245 = vadd.f32 %v54, %v244
  %v246 = vpop.f32.mrb[0].mxu0
  %247 = vmatprep.mubr.bf16.mxu0 %v187
  %248 = vmatmul.mubr.bf16.gmra.mrb[0].mxu0 %v106
  %v249 = vpop.f32.mrb[0].mxu0
  %v250 = vadd.f32 %v54, %v249
  %v251 = vpop.f32.mrb[0].mxu0
  %v252 = vpop.f32.mrb[0].mxu0
  %v253 = vadd.f32 %v54, %v252
  %v254 = vpop.f32.mrb[0].mxu0
  %255 = vmatprep.mubr.bf16.mxu0 %v190
  %256 = vmatmul.mubr.bf16.gmra.mrb[0].mxu0 %v108
  %v257 = vpop.f32.mrb[0].mxu0
  %v258 = vadd.f32 %v54, %v257
  %v259 = vpop.f32.mrb[0].mxu0
  %v260 = vpop.f32.mrb[0].mxu0
  %v261 = vadd.f32 %v54, %v260
  %v262 = vpop.f32.mrb[0].mxu0
  %263 = vmatprep.mubr.bf16.mxu0 %v193
  %264 = vmatmul.mubr.bf16.gmra.mrb[0].mxu0 %v110
  %v265 = vpop.f32.mrb[0].mxu0
  %v266 = vadd.f32 %v54, %v265
  %v267 = vpop.f32.mrb[0].mxu0
  %v268 = vpop.f32.mrb[0].mxu0
  %v269 = vadd.f32 %v54, %v268
  %v270 = vpop.f32.mrb[0].mxu0
  %271 = vmatprep.mubr.bf16.mxu0 %v196
  %272 = vmatmul.mubr.bf16.gmra.mrb[0].mxu0 %v112
  %v273 = vpop.f32.mrb[0].mxu0
  %v274 = vadd.f32 %v54, %v273
  %v275 = vpop.f32.mrb[0].mxu0
  %v276 = vpop.f32.mrb[0].mxu0
  %v277 = vadd.f32 %v54, %v276
  %v278 = vpop.f32.mrb[0].mxu0
  %279 = vmatprep.mubr.bf16.mxu0 %v199
  %280 = vmatmul.mubr.bf16.gmra.mrb[0].mxu0 %v114
  %v281 = vpop.f32.mrb[0].mxu0
  %v282 = vadd.f32 %v54, %v281
  %v283 = vpop.f32.mrb[0].mxu0
  %v284 = vpop.f32.mrb[0].mxu0
  %v285 = vadd.f32 %v54, %v284
  %v286 = vpop.f32.mrb[0].mxu0
  %287 = vmatprep.mubr.bf16.mxu0 %v202
  %288 = vmatmul.mubr.bf16.gmra.mrb[0].mxu0 %v116
  %v289 = vpop.f32.mrb[0].mxu0
  %v290 = vadd.f32 %v54, %v289
  %v291 = vpop.f32.mrb[0].mxu0
  %v292 = vpop.f32.mrb[0].mxu0
  %v293 = vadd.f32 %v54, %v292
  %v294 = vpop.f32.mrb[0].mxu0
  %295 = vmatprep.mubr.bf16.mxu0 %v205
  %296 = vmatmul.mubr.bf16.gmra.mrb[0].mxu0 %v118
  %v297 = vpop.f32.mrb[0].mxu0
  %v298 = vadd.f32 %v54, %v297
  %v299 = vpop.f32.mrb[0].mxu0
  %v300 = vpop.f32.mrb[0].mxu0
  %v301 = vadd.f32 %v54, %v300
  %v302 = vpop.f32.mrb[0].mxu0
  %303 = vdwg.mxu0
  %vm304 = vcmask 261120
  %305 = vst.msk [vmem:[%s3] sm:$0xff] %vm304, %v242
  %306 = vst.msk [vmem:[%s3 + $0x8] sm:$0xff] %vm304, %v245
  %307 = vst.msk [vmem:[%s3 + $0x10] sm:$0xff] %vm304, %v250
  %308 = vst.msk [vmem:[%s3 + $0x18] sm:$0xff] %vm304, %v253
  %309 = vst.msk [vmem:[%s3 + $0x20] sm:$0xff] %vm304, %v258
  %310 = vst.msk [vmem:[%s3 + $0x28] sm:$0xff] %vm304, %v261
  %311 = vst.msk [vmem:[%s3 + $0x30] sm:$0xff] %vm304, %v266
  %312 = vst.msk [vmem:[%s3 + $0x38] sm:$0xff] %vm304, %v269
  %313 = vst.msk [vmem:[%s3 + $0x40] sm:$0xff] %vm304, %v274
  %314 = vst.msk [vmem:[%s3 + $0x48] sm:$0xff] %vm304, %v277
  %315 = vst.msk [vmem:[%s3 + $0x50] sm:$0xff] %vm304, %v282
  %316 = vst.msk [vmem:[%s3 + $0x58] sm:$0xff] %vm304, %v285
  %317 = vst.msk [vmem:[%s3 + $0x60] sm:$0xff] %vm304, %v290
  %318 = vst.msk [vmem:[%s3 + $0x68] sm:$0xff] %vm304, %v293
  %319 = vst.msk [vmem:[%s3 + $0x70] sm:$0xff] %vm304, %v298
  %320 = vst.msk [vmem:[%s3 + $0x78] sm:$0xff] %vm304, %v301
  // Predicated region
  $region14: #{tpu_custom_call.1} parent=0 // pred_check
    _
  $region15: #{tpu_custom_call.1} parent=0 // pred_check_branch
    %322 = sbr.rel (0) target = $region17
  $region16: #{tpu_custom_call.1} parent=0 // pred_region
    _
  $region17: #{tpu_custom_call.1} parent=0 // pred_fallthru
    _
  // Predicated region
  $region18: #{tpu_custom_call.1} parent=0 // pred_check
    _
  $region19: #{tpu_custom_call.1} parent=0 // pred_check_branch
    %324 = sbr.rel (0) target = $region21
  $region20: #{tpu_custom_call.1} parent=0 // pred_region
    _
  $region21: #{tpu_custom_call.1} parent=0 // pred_fallthru
    _

</llo_original>
